<compile_context>
chip_gen: v7x
topology: tpu7x:2x2x1
jax: 0.10.0
libtpu: 0.0.40
codegen_flags: <defaults>
</compile_context>

<pallas_src>
import jax
import jax.numpy as jnp
from jax.experimental import pallas as pl
from jax.experimental.pallas import tpu as pltpu

_LANE = 128
_SUBLANE = 8


def _round_up(n, m):
    return ((n + m - 1) // m) * m


def _vmem_capacity_bytes():
    """Physical VMEM per core; conservative (v7x = 64 MiB) fallback."""
    try:
        cap = getattr(pltpu.get_tpu_info(), "vmem_capacity_bytes", None)
        if cap:
            return int(cap)
    except Exception:
        pass
    return 64 << 20


def _fc_model_kernel(x_ref, w1_ref, b1_ref, w2_ref, b2_ref, w3_ref, b3_ref, o_ref):
    """Fused 3-layer MLP forward on one (tile_b, F) batch tile."""
    x = x_ref[...]
    # Hoist bias loads (JAX does not CSE broadcast_in_dim).
    b1 = b1_ref[...]
    b2 = b2_ref[...]
    b3 = b3_ref[...]

    h1 = jnp.dot(x, w1_ref[...], preferred_element_type=jnp.float32) + b1
    h1 = jnp.maximum(h1, 0.0)  # ReLU

    h2 = jnp.dot(h1, w2_ref[...], preferred_element_type=jnp.float32) + b2
    h2 = jnp.maximum(h2, 0.0)  # ReLU

    y = jnp.dot(h2, w3_ref[...], preferred_element_type=jnp.float32) + b3
    # Narrow store: o_ref is (tile_b, out_chs); HBM writeback moves only the
    # real out_chs columns.
    o_ref[...] = y.astype(o_ref.dtype)


def fc_model_forward(x, params, *, tile_b=8192):
    """Run the fused MLP Pallas kernel.

    x: (B, numFeats) float32
    params: dict of w1 (F,32), b1 (1,32), w2 (32,32), b2 (1,32),
            w3 (32,C), b3 (1,C)  -- biases kept 2-D for clean VMEM layout.
    Returns (B, C) float32, identical semantics to FcModel.forward.
    """
    w1, b1 = params["w1"], params["b1"]
    w2, b2 = params["w2"], params["b2"]
    w3, b3 = params["w3"], params["b3"]

    B, F = x.shape
    C = w3.shape[1]

    # ---- VMEM budget / tile derivation -------------------------------------
    # Per-row f32 VMEM cost with lane padding to 128:
    #   x block x2 (double-buffered) + out block x2 (double-buffered)
    #   + ~5 lane-padded temporaries (loaded x copy, h1, h2, y, slack).
    f_pad = _round_up(F, _LANE)
    c_pad = _round_up(C, _LANE)
    per_row_bytes = 4 * (2 * f_pad + 2 * c_pad + 5 * _LANE)

    cap = _vmem_capacity_bytes()
    # Leave headroom for compiler scratch; ~48 MiB on v7x (64 MiB physical),
    # ~96 MiB on v5e/v6e (128 MiB physical).
    budget = max(min(cap * 3 // 4, cap - (12 << 20)), 16 << 20)

    max_tile_rows = max(_SUBLANE, (budget - (2 << 20)) // per_row_bytes)
    tile_b_eff = min(tile_b, max_tile_rows, _round_up(B, _SUBLANE))
    tile_b_eff = max(_SUBLANE, (tile_b_eff // _SUBLANE) * _SUBLANE)

    grid = (pl.cdiv(B, tile_b_eff),)

    const2d = lambda a: pl.BlockSpec(a.shape, lambda i: (0, 0))

    out = pl.pallas_call(
        _fc_model_kernel,
        out_shape=jax.ShapeDtypeStruct((B, C), x.dtype),
        grid=grid,
        in_specs=[
            pl.BlockSpec((tile_b_eff, F), lambda i: (i, 0)),  # x: tiled over batch
            const2d(w1), const2d(b1),
            const2d(w2), const2d(b2),
            const2d(w3), const2d(b3),
        ],
        out_specs=pl.BlockSpec((tile_b_eff, C), lambda i: (i, 0)),
        compiler_params=pltpu.CompilerParams(
            dimension_semantics=("parallel",),
            vmem_limit_bytes=int(budget),
        ),
    )(x, w1, b1, w2, b2, w3, b3)

    return out


def init_params(key, num_feats, out_chs):
    """Deterministic init mimicking PyTorch nn.Linear default (uniform +/- 1/sqrt(fan_in))."""
    ks = jax.random.split(key, 6)

    def linear(kw, kb, fan_in, fan_out):
        bound = 1.0 / jnp.sqrt(jnp.float32(fan_in))
        w = jax.random.uniform(kw, (fan_in, fan_out), jnp.float32, -bound, bound)
        b = jax.random.uniform(kb, (1, fan_out), jnp.float32, -bound, bound)
        return w, b

    w1, b1 = linear(ks[0], ks[1], num_feats, 32)
    w2, b2 = linear(ks[2], ks[3], 32, 32)
    w3, b3 = linear(ks[4], ks[5], 32, out_chs)
    return {"w1": w1, "b1": b1, "w2": w2, "b2": b2, "w3": w3, "b3": b3}


def reference_forward(x, params):
    """Pure-JAX reference for correctness checking."""
    h = jnp.maximum(x @ params["w1"] + params["b1"], 0.0)
    h = jnp.maximum(h @ params["w2"] + params["b2"], 0.0)
    return h @ params["w3"] + params["b3"]


if __name__ == "__main__":
    num_feats = 16
    out_chs = 4
    batch = 8

    key = jax.random.PRNGKey(0)
    k_x, k_p = jax.random.split(key)
    x = jax.random.normal(k_x, (batch, num_feats), dtype=jnp.float32)
    params = init_params(k_p, num_feats, out_chs)

    out = jax.block_until_ready(fc_model_forward(x, params))
    ref = reference_forward(x, params)
    assert out.shape == (batch, out_chs)
    assert jnp.allclose(out, ref, atol=1e-5, rtol=1e-5), "mismatch vs reference"

    # Exercise the ragged-tail path (B not a multiple of 8 / tile) and a
    # multi-tile grid (small tile override) to validate clipped edge blocks.
    for b2_, tb in ((13, 8192), (1000, 256)):
        x2 = jax.random.normal(jax.random.PRNGKey(1), (b2_, num_feats), jnp.float32)
        o2 = jax.block_until_ready(fc_model_forward(x2, params, tile_b=tb))
        r2 = reference_forward(x2, params)
        assert o2.shape == (b2_, out_chs)
        assert jnp.allclose(o2, r2, atol=1e-4, rtol=1e-4), f"mismatch at B={b2_}"

    print("KERNEL_OK")
</pallas_src>

<mosaic_0001>
module attributes {stable_mosaic.version = 11 : i64} {
  func.func @_fc_model_kernel(%arg0: i32, %arg1: memref<8x16xf32, #tpu.memory_space<vmem>>, %arg2: memref<16x32xf32, #tpu.memory_space<vmem>>, %arg3: memref<1x32xf32, #tpu.memory_space<vmem>>, %arg4: memref<32x32xf32, #tpu.memory_space<vmem>>, %arg5: memref<1x32xf32, #tpu.memory_space<vmem>>, %arg6: memref<32x4xf32, #tpu.memory_space<vmem>>, %arg7: memref<1x4xf32, #tpu.memory_space<vmem>>, %arg8: memref<8x4xf32, #tpu.memory_space<vmem>>) attributes {dimension_semantics = [#tpu.dimension_semantics<parallel>], iteration_bounds = array<i64: 1>, scalar_prefetch = 0 : i64, scratch_operands = 0 : i64, tpu.core_type = #tpu.core_type<tc>, window_params = [{transform_indices = @transform_0, window_bounds = array<i64: 8, 16>}, {pipeline_mode = #tpu.pipeline_mode<synchronous>, transform_indices = @transform_1, window_bounds = array<i64: 16, 32>}, {pipeline_mode = #tpu.pipeline_mode<synchronous>, transform_indices = @transform_2, window_bounds = array<i64: 1, 32>}, {pipeline_mode = #tpu.pipeline_mode<synchronous>, transform_indices = @transform_3, window_bounds = array<i64: 32, 32>}, {pipeline_mode = #tpu.pipeline_mode<synchronous>, transform_indices = @transform_4, window_bounds = array<i64: 1, 32>}, {pipeline_mode = #tpu.pipeline_mode<synchronous>, transform_indices = @transform_5, window_bounds = array<i64: 32, 4>}, {pipeline_mode = #tpu.pipeline_mode<synchronous>, transform_indices = @transform_6, window_bounds = array<i64: 1, 4>}, {transform_indices = @transform_7, window_bounds = array<i64: 8, 4>}]} {
    %c0 = arith.constant 0 : index
    %c0_0 = arith.constant 0 : index
    %0 = vector.load %arg1[%c0, %c0_0] : memref<8x16xf32, #tpu.memory_space<vmem>>, vector<8x16xf32>
    %c0_1 = arith.constant 0 : index
    %c0_2 = arith.constant 0 : index
    %1 = vector.load %arg3[%c0_1, %c0_2] : memref<1x32xf32, #tpu.memory_space<vmem>>, vector<1x32xf32>
    %c0_3 = arith.constant 0 : index
    %c0_4 = arith.constant 0 : index
    %2 = vector.load %arg5[%c0_3, %c0_4] : memref<1x32xf32, #tpu.memory_space<vmem>>, vector<1x32xf32>
    %c0_5 = arith.constant 0 : index
    %c0_6 = arith.constant 0 : index
    %3 = vector.load %arg7[%c0_5, %c0_6] : memref<1x4xf32, #tpu.memory_space<vmem>>, vector<1x4xf32>
    %c0_7 = arith.constant 0 : index
    %c0_8 = arith.constant 0 : index
    %4 = vector.load %arg2[%c0_7, %c0_8] : memref<16x32xf32, #tpu.memory_space<vmem>>, vector<16x32xf32>
    %cst = arith.constant dense<0.000000e+00> : vector<8x32xf32>
    %5 = tpu.matmul %0, %4, %cst {dimension_numbers = #tpu.dot_dimension_numbers<[1], [0], [0], [1], [0, 0, 1, 1], [], []>} : vector<8x16xf32>, vector<16x32xf32>, vector<8x32xf32> -> vector<8x32xf32>
    %6 = vector.broadcast %1 : vector<1x32xf32> to vector<8x32xf32>
    %7 = arith.addf %5, %6 : vector<8x32xf32>
    %cst_9 = arith.constant 0.000000e+00 : f32
    %8 = vector.broadcast %cst_9 : f32 to vector<8x32xf32>
    %9 = arith.maximumf %7, %8 : vector<8x32xf32>
    %c0_10 = arith.constant 0 : index
    %c0_11 = arith.constant 0 : index
    %10 = vector.load %arg4[%c0_10, %c0_11] : memref<32x32xf32, #tpu.memory_space<vmem>>, vector<32x32xf32>
    %cst_12 = arith.constant dense<0.000000e+00> : vector<8x32xf32>
    %11 = tpu.matmul %9, %10, %cst_12 {dimension_numbers = #tpu.dot_dimension_numbers<[1], [0], [0], [1], [0, 0, 1, 1], [], []>} : vector<8x32xf32>, vector<32x32xf32>, vector<8x32xf32> -> vector<8x32xf32>
    %12 = vector.broadcast %2 : vector<1x32xf32> to vector<8x32xf32>
    %13 = arith.addf %11, %12 : vector<8x32xf32>
    %cst_13 = arith.constant 0.000000e+00 : f32
    %14 = vector.broadcast %cst_13 : f32 to vector<8x32xf32>
    %15 = arith.maximumf %13, %14 : vector<8x32xf32>
    %c0_14 = arith.constant 0 : index
    %c0_15 = arith.constant 0 : index
    %16 = vector.load %arg6[%c0_14, %c0_15] : memref<32x4xf32, #tpu.memory_space<vmem>>, vector<32x4xf32>
    %cst_16 = arith.constant dense<0.000000e+00> : vector<8x4xf32>
    %17 = tpu.matmul %15, %16, %cst_16 {dimension_numbers = #tpu.dot_dimension_numbers<[1], [0], [0], [1], [0, 0, 1, 1], [], []>} : vector<8x32xf32>, vector<32x4xf32>, vector<8x4xf32> -> vector<8x4xf32>
    %18 = vector.broadcast %3 : vector<1x4xf32> to vector<8x4xf32>
    %19 = arith.addf %17, %18 : vector<8x4xf32>
    %c0_17 = arith.constant 0 : index
    %c0_18 = arith.constant 0 : index
    %20 = vector.load %arg8[%c0_17, %c0_18] : memref<8x4xf32, #tpu.memory_space<vmem>>, vector<8x4xf32>
    tpu.vector_store %arg8[%c0_17, %c0_18], %19 {strides = array<i32>} : memref<8x4xf32, #tpu.memory_space<vmem>>, vector<8x4xf32>,
    return
  }
  func.func @transform_0(%arg0: i32) -> (i32, i32) {
    %c0_i32 = arith.constant 0 : i32
    %c0_i32_0 = arith.constant 0 : i32
    return %arg0, %c0_i32 : i32, i32
  }
  func.func @transform_1(%arg0: i32) -> (i32, i32) {
    %c0_i32 = arith.constant 0 : i32
    %c0_i32_0 = arith.constant 0 : i32
    %c0_i32_1 = arith.constant 0 : i32
    return %c0_i32, %c0_i32_0 : i32, i32
  }
  func.func @transform_2(%arg0: i32) -> (i32, i32) {
    %c0_i32 = arith.constant 0 : i32
    %c0_i32_0 = arith.constant 0 : i32
    %c0_i32_1 = arith.constant 0 : i32
    return %c0_i32, %c0_i32_0 : i32, i32
  }
  func.func @transform_3(%arg0: i32) -> (i32, i32) {
    %c0_i32 = arith.constant 0 : i32
    %c0_i32_0 = arith.constant 0 : i32
    %c0_i32_1 = arith.constant 0 : i32
    return %c0_i32, %c0_i32_0 : i32, i32
  }
  func.func @transform_4(%arg0: i32) -> (i32, i32) {
    %c0_i32 = arith.constant 0 : i32
    %c0_i32_0 = arith.constant 0 : i32
    %c0_i32_1 = arith.constant 0 : i32
    return %c0_i32, %c0_i32_0 : i32, i32
  }
  func.func @transform_5(%arg0: i32) -> (i32, i32) {
    %c0_i32 = arith.constant 0 : i32
    %c0_i32_0 = arith.constant 0 : i32
    %c0_i32_1 = arith.constant 0 : i32
    return %c0_i32, %c0_i32_0 : i32, i32
  }
  func.func @transform_6(%arg0: i32) -> (i32, i32) {
    %c0_i32 = arith.constant 0 : i32
    %c0_i32_0 = arith.constant 0 : i32
    %c0_i32_1 = arith.constant 0 : i32
    return %c0_i32, %c0_i32_0 : i32, i32
  }
  func.func @transform_7(%arg0: i32) -> (i32, i32) {
    %c0_i32 = arith.constant 0 : i32
    %c0_i32_0 = arith.constant 0 : i32
    return %arg0, %c0_i32 : i32, i32
  }
}

</mosaic_0001>

<llo_original>
// kernel: tpu_custom_call.1
$region0: #{tpu_custom_call.1}
  #allocation0 [shape = 'u32[]', space=smem, size = 0x4, offset = 0x4, fixed_abs, tag = 'smem constant byte address 0x4 - core index']
  #allocation1 [shape = 'u32[144,128]{1,0:T(1,128)}', space=vmem, size = 0x12000, scoped, tag = 'internal scratch']
  %s0 = inlined_call_operand.vmem [shape: f32[8,16], index: 0, kind: input, shape index: {}]
  %s1 = inlined_call_operand.hbm [shape: f32[16,32], index: 1, kind: input, shape index: {}]
  %s2 = inlined_call_operand.vmem [shape: f32[1,32], index: 2, kind: input, shape index: {}]
  %s3 = inlined_call_operand.vmem [shape: f32[32,32], index: 3, kind: input, shape index: {}]
  %s4 = inlined_call_operand.vmem [shape: f32[1,32], index: 4, kind: input, shape index: {}]
  %s5 = inlined_call_operand.vmem [shape: f32[32,4], index: 5, kind: input, shape index: {}]
  %s6 = inlined_call_operand.vmem [shape: f32[1,4], index: 6, kind: input, shape index: {}]
  %s7 = inlined_call_operand.vmem [shape: f32[8,4], index: 7, kind: output, shape index: {}]
  %s8 = sld [smem:[#allocation0]]
  $region42: #{tpu_custom_call.1} parent=0
    _
  %s10 = ssub.s32 1, %s8
  %s11 = scalar_select 0, %s10, %s8
  $region1: #{tpu_custom_call.1} parent=0
    #allocation2 [shape = 'u8[8192]{0}', space=vmem, size = 0x2000, scoped, tag = 'input window, operand 1, single buffered']
    #allocation3 [shape = 's32[1]{0}', space=sflag, size = 0x4, scoped, tag = 'scoped memory for tpu_custom_call.1']
    %12 = vsyncpa [#allocation3], 0
    // Predicated region
    $region2: #{tpu_custom_call.1} parent=1 // pred_check
      _
    $region3: #{tpu_custom_call.1} parent=1 // pred_check_branch
      %14 = sbr.rel (0) target = $region5
    $region4: #{tpu_custom_call.1} parent=1 // pred_region
      _
    $region5: #{tpu_custom_call.1} parent=1 // pred_fallthru
      _
    // Predicated region
    $region6: #{tpu_custom_call.1} parent=1 // pred_check
      _
    $region7: #{tpu_custom_call.1} parent=1 // pred_check_branch
      %16 = sbr.rel (0) target = $region9
    $region8: #{tpu_custom_call.1} parent=1 // pred_region
      %s18 = ssub.s32 256, 256
      %19 = vsyncadd [#allocation3], %s18
      %s20 = sshll.u32 [#allocation2], 4
      %s21 = int_to_ptr.vmem [resolvable:$true] %s20
      %26 = dma.hbm_to_vmem [thread:$0]  %s1, 256, %s21, [#allocation3], 128, 128, 8
    $region9: #{tpu_custom_call.1} parent=1 // pred_fallthru
      _
    // Predicated region
    $region10: #{tpu_custom_call.1} parent=1 // pred_check
      _
    $region11: #{tpu_custom_call.1} parent=1 // pred_check_branch
      %28 = sbr.rel (0) target = $region13
    $region12: #{tpu_custom_call.1} parent=1 // pred_region
      _
    $region13: #{tpu_custom_call.1} parent=1 // pred_fallthru
      _
    // Predicated region
    $region14: #{tpu_custom_call.1} parent=1 // pred_check
      _
    $region15: #{tpu_custom_call.1} parent=1 // pred_check_branch
      %30 = sbr.rel (0) target = $region17
    $region16: #{tpu_custom_call.1} parent=1 // pred_region
      _
    $region17: #{tpu_custom_call.1} parent=1 // pred_fallthru
      _
    // Predicated region
    $region18: #{tpu_custom_call.1} parent=1 // pred_check
      _
    $region19: #{tpu_custom_call.1} parent=1 // pred_check_branch
      %32 = sbr.rel (0) target = $region21
    $region20: #{tpu_custom_call.1} parent=1 // pred_region
      _
    $region21: #{tpu_custom_call.1} parent=1 // pred_fallthru
      _
    // Predicated region
    $region22: #{tpu_custom_call.1} parent=1 // pred_check
      _
    $region23: #{tpu_custom_call.1} parent=1 // pred_check_branch
      %34 = sbr.rel (0) target = $region25
    $region24: #{tpu_custom_call.1} parent=1 // pred_region
      _
    $region25: #{tpu_custom_call.1} parent=1 // pred_fallthru
      _
    // Predicated region
    $region26: #{tpu_custom_call.1} parent=1 // pred_check
      _
    $region27: #{tpu_custom_call.1} parent=1 // pred_check_branch
      %36 = sbr.rel (0) target = $region29
    $region28: #{tpu_custom_call.1} parent=1 // pred_region
      _
    $region29: #{tpu_custom_call.1} parent=1 // pred_fallthru
      _
    // Predicated region
    $region30: #{tpu_custom_call.1} parent=1 // pred_check
      _
    $region31: #{tpu_custom_call.1} parent=1 // pred_check_branch
      %38 = sbr.rel (0) target = $region33
    $region32: #{tpu_custom_call.1} parent=1 // pred_region
      %39 = dma.done [#allocation3], 256
    $region33: #{tpu_custom_call.1} parent=1 // pred_fallthru
      _
    %v40 = vld [vmem:[%s0] sm:$0xff]
    %v41 = vld [vmem:[%s2] sm:$0x1]
    %v42 = vld [vmem:[%s4] sm:$0x1]
    %v43 = vld [vmem:[%s6] sm:$0x1]
    %v44 = vld [vmem:[#allocation2] sm:$0xff]
    %v45 = vld [vmem:[#allocation2 + $0x8] sm:$0xff]
    %v47 = vlaneseq
    %v48 = vshrl.u32 %v47, 7
    %v49 = vsub.s32 0, %v48
    %v50 = vrot.slane %v41, %v49
    %vm52 = vcmask 130048
    %v54 = vsel %vm52, %v40, 0
    %56 = vmatprep.subr.mxu0 0.0
    %57 = vmatpush1.msra.mxu0 %v44
    %58 = vmatprep.subr.mxu0 0.0
    %59 = vmatpush1.msra.mxu0 %v45
    %60 = vmatprep.subr.mxu0 0.0
    %61 = vmatpush1.msra.mxu0 0.0
    %62 = vmatprep.subr.mxu0 0.0
    %63 = vmatpush1.msra.mxu0 0.0
    %64 = vmatprep.subr.mxu0 0.0
    %65 = vmatpush1.msra.mxu0 0.0
    %66 = vmatprep.subr.mxu0 0.0
    %67 = vmatpush1.msra.mxu0 0.0
    %68 = vmatprep.subr.mxu0 0.0
    %69 = vmatpush1.msra.mxu0 0.0
    %70 = vmatprep.subr.mxu0 0.0
    %71 = vmatpush1.msra.mxu0 0.0
    %72 = vmatprep.subr.mxu0 0.0
    %73 = vmatpush1.msra.mxu0 0.0
    %74 = vmatprep.subr.mxu0 0.0
    %75 = vmatpush1.msra.mxu0 0.0
    %76 = vmatprep.subr.mxu0 0.0
    %77 = vmatpush1.msra.mxu0 0.0
    %78 = vmatprep.subr.mxu0 0.0
    %79 = vmatpush1.msra.mxu0 0.0
    %80 = vmatprep.subr.mxu0 0.0
    %81 = vmatpush1.msra.mxu0 0.0
    %82 = vmatprep.subr.mxu0 0.0
    %83 = vmatpush1.msra.mxu0 0.0
    %84 = vmatprep.subr.mxu0 0.0
    %85 = vmatpush1.msra.mxu0 0.0
    %86 = vmatprep.subr.mxu0 0.0
    %87 = vmatpush1.msra.mxu0 0.0
    %88 = vmatprep.subr.mxu0 0.0
    %89 = vmatpush1.msra.mxu0 0.0
    %90 = vmatprep.subr.mxu0 0.0
    %91 = vmatpush1.msra.mxu0 0.0
    %92 = vmatprep.subr.mxu0 0.0
    %93 = vmatpush1.msra.mxu0 0.0
    %94 = vmatprep.subr.mxu0 0.0
    %95 = vmatpush1.msra.mxu0 0.0
    %96 = vmatprep.subr.mxu0 0.0
    %97 = vmatpush1.msra.mxu0 0.0
    %98 = vmatprep.subr.mxu0 0.0
    %99 = vmatpush1.msra.mxu0 0.0
    %100 = vmatprep.subr.mxu0 0.0
    %101 = vmatpush1.msra.mxu0 0.0
    %102 = vmatprep.subr.mxu0 0.0
    %103 = vmatpush1.msra.mxu0 0.0
    %104 = vmatprep.subr.mxu0 0.0
    %105 = vmatpush1.msra.mxu0 0.0
    %106 = vmatprep.subr.mxu0 0.0
    %107 = vmatpush1.msra.mxu0 0.0
    %108 = vmatprep.subr.mxu0 0.0
    %109 = vmatpush1.msra.mxu0 0.0
    %110 = vmatprep.subr.mxu0 0.0
    %111 = vmatpush1.msra.mxu0 0.0
    %112 = vmatprep.subr.mxu0 0.0
    %113 = vmatpush1.msra.mxu0 0.0
    %114 = vmatprep.subr.mxu0 0.0
    %115 = vmatpush1.msra.mxu0 0.0
    %116 = vmatprep.subr.mxu0 0.0
    %117 = vmatpush1.msra.mxu0 0.0
    %118 = vmatprep.subr.mxu0 0.0
    %119 = vmatpush1.msra.mxu0 0.0
    %120 = vmatprep.mubr.f32.mxu0 0.0
    %121 = vmatmul.mubr.f32.gmra.mrb[0].mxu0 %v54
    %v122 = vpop.f32.mrb[0].mxu0
    %v123 = vadd.f32 %v50, %v122
    %v124 = vpop.f32.mrb[0].mxu0
    %125 = vdwg.mxu0
    %v126 = vmax.f32 %v123, 0.0
    %v127 = vld [vmem:[%s3] sm:$0xff]
    %v128 = vld [vmem:[%s3 + $0x8] sm:$0xff]
    %v129 = vld [vmem:[%s3 + $0x10] sm:$0xff]
    %v130 = vld [vmem:[%s3 + $0x18] sm:$0xff]
    %v132 = vlaneseq
    %v133 = vshrl.u32 %v132, 7
    %v134 = vsub.s32 0, %v133
    %v135 = vrot.slane %v42, %v134
    %vm137 = vcmask 261120
    %v139 = vsel %vm137, %v126, 0
    %141 = vmatprep.subr.mxu0 0.0
    %142 = vmatpush1.msra.mxu0 %v127
    %143 = vmatprep.subr.mxu0 0.0
    %144 = vmatpush1.msra.mxu0 %v128
    %145 = vmatprep.subr.mxu0 0.0
    %146 = vmatpush1.msra.mxu0 %v129
    %147 = vmatprep.subr.mxu0 0.0
    %148 = vmatpush1.msra.mxu0 %v130
    %149 = vmatprep.subr.mxu0 0.0
    %150 = vmatpush1.msra.mxu0 0.0
    %151 = vmatprep.subr.mxu0 0.0
    %152 = vmatpush1.msra.mxu0 0.0
    %153 = vmatprep.subr.mxu0 0.0
    %154 = vmatpush1.msra.mxu0 0.0
    %155 = vmatprep.subr.mxu0 0.0
    %156 = vmatpush1.msra.mxu0 0.0
    %157 = vmatprep.subr.mxu0 0.0
    %158 = vmatpush1.msra.mxu0 0.0
    %159 = vmatprep.subr.mxu0 0.0
    %160 = vmatpush1.msra.mxu0 0.0
    %161 = vmatprep.subr.mxu0 0.0
    %162 = vmatpush1.msra.mxu0 0.0
    %163 = vmatprep.subr.mxu0 0.0
    %164 = vmatpush1.msra.mxu0 0.0
    %165 = vmatprep.subr.mxu0 0.0
    %166 = vmatpush1.msra.mxu0 0.0
    %167 = vmatprep.subr.mxu0 0.0
    %168 = vmatpush1.msra.mxu0 0.0
    %169 = vmatprep.subr.mxu0 0.0
    %170 = vmatpush1.msra.mxu0 0.0
    %171 = vmatprep.subr.mxu0 0.0
    %172 = vmatpush1.msra.mxu0 0.0
    %173 = vmatprep.subr.mxu0 0.0
    %174 = vmatpush1.msra.mxu0 0.0
    %175 = vmatprep.subr.mxu0 0.0
    %176 = vmatpush1.msra.mxu0 0.0
    %177 = vmatprep.subr.mxu0 0.0
    %178 = vmatpush1.msra.mxu0 0.0
    %179 = vmatprep.subr.mxu0 0.0
    %180 = vmatpush1.msra.mxu0 0.0
    %181 = vmatprep.subr.mxu0 0.0
    %182 = vmatpush1.msra.mxu0 0.0
    %183 = vmatprep.subr.mxu0 0.0
    %184 = vmatpush1.msra.mxu0 0.0
    %185 = vmatprep.subr.mxu0 0.0
    %186 = vmatpush1.msra.mxu0 0.0
    %187 = vmatprep.subr.mxu0 0.0
    %188 = vmatpush1.msra.mxu0 0.0
    %189 = vmatprep.subr.mxu0 0.0
    %190 = vmatpush1.msra.mxu0 0.0
    %191 = vmatprep.subr.mxu0 0.0
    %192 = vmatpush1.msra.mxu0 0.0
    %193 = vmatprep.subr.mxu0 0.0
    %194 = vmatpush1.msra.mxu0 0.0
    %195 = vmatprep.subr.mxu0 0.0
    %196 = vmatpush1.msra.mxu0 0.0
    %197 = vmatprep.subr.mxu0 0.0
    %198 = vmatpush1.msra.mxu0 0.0
    %199 = vmatprep.subr.mxu0 0.0
    %200 = vmatpush1.msra.mxu0 0.0
    %201 = vmatprep.subr.mxu0 0.0
    %202 = vmatpush1.msra.mxu0 0.0
    %203 = vmatprep.subr.mxu0 0.0
    %204 = vmatpush1.msra.mxu0 0.0
    %205 = vmatprep.mubr.f32.mxu0 0.0
    %206 = vmatmul.mubr.f32.gmra.mrb[0].mxu0 %v139
    %v207 = vpop.f32.mrb[0].mxu0
    %v208 = vadd.f32 %v135, %v207
    %v209 = vpop.f32.mrb[0].mxu0
    %210 = vdwg.mxu0
    %v211 = vmax.f32 %v208, 0.0
    %v212 = vld [vmem:[%s5] sm:$0xff]
    %v213 = vld [vmem:[%s5 + $0x8] sm:$0xff]
    %v214 = vld [vmem:[%s5 + $0x10] sm:$0xff]
    %v215 = vld [vmem:[%s5 + $0x18] sm:$0xff]
    %v217 = vlaneseq
    %v218 = vshrl.u32 %v217, 7
    %v219 = vsub.s32 0, %v218
    %v220 = vrot.slane %v43, %v219
    %v223 = vsel %vm137, %v211, 0
    %225 = vmatprep.subr.mxu0 0.0
    %226 = vmatpush1.msra.mxu0 %v212
    %227 = vmatprep.subr.mxu0 0.0
    %228 = vmatpush1.msra.mxu0 %v213
    %229 = vmatprep.subr.mxu0 0.0
    %230 = vmatpush1.msra.mxu0 %v214
    %231 = vmatprep.subr.mxu0 0.0
    %232 = vmatpush1.msra.mxu0 %v215
    %233 = vmatprep.subr.mxu0 0.0
    %234 = vmatpush1.msra.mxu0 0.0
    %235 = vmatprep.subr.mxu0 0.0
    %236 = vmatpush1.msra.mxu0 0.0
    %237 = vmatprep.subr.mxu0 0.0
    %238 = vmatpush1.msra.mxu0 0.0
    %239 = vmatprep.subr.mxu0 0.0
    %240 = vmatpush1.msra.mxu0 0.0
    %241 = vmatprep.subr.mxu0 0.0
    %242 = vmatpush1.msra.mxu0 0.0
    %243 = vmatprep.subr.mxu0 0.0
    %244 = vmatpush1.msra.mxu0 0.0
    %245 = vmatprep.subr.mxu0 0.0
    %246 = vmatpush1.msra.mxu0 0.0
    %247 = vmatprep.subr.mxu0 0.0
    %248 = vmatpush1.msra.mxu0 0.0
    %249 = vmatprep.subr.mxu0 0.0
    %250 = vmatpush1.msra.mxu0 0.0
    %251 = vmatprep.subr.mxu0 0.0
    %252 = vmatpush1.msra.mxu0 0.0
    %253 = vmatprep.subr.mxu0 0.0
    %254 = vmatpush1.msra.mxu0 0.0
    %255 = vmatprep.subr.mxu0 0.0
    %256 = vmatpush1.msra.mxu0 0.0
    %257 = vmatprep.subr.mxu0 0.0
    %258 = vmatpush1.msra.mxu0 0.0
    %259 = vmatprep.subr.mxu0 0.0
    %260 = vmatpush1.msra.mxu0 0.0
    %261 = vmatprep.subr.mxu0 0.0
    %262 = vmatpush1.msra.mxu0 0.0
    %263 = vmatprep.subr.mxu0 0.0
    %264 = vmatpush1.msra.mxu0 0.0
    %265 = vmatprep.subr.mxu0 0.0
    %266 = vmatpush1.msra.mxu0 0.0
    %267 = vmatprep.subr.mxu0 0.0
    %268 = vmatpush1.msra.mxu0 0.0
    %269 = vmatprep.subr.mxu0 0.0
    %270 = vmatpush1.msra.mxu0 0.0
    %271 = vmatprep.subr.mxu0 0.0
    %272 = vmatpush1.msra.mxu0 0.0
    %273 = vmatprep.subr.mxu0 0.0
    %274 = vmatpush1.msra.mxu0 0.0
    %275 = vmatprep.subr.mxu0 0.0
    %276 = vmatpush1.msra.mxu0 0.0
    %277 = vmatprep.subr.mxu0 0.0
    %278 = vmatpush1.msra.mxu0 0.0
    %279 = vmatprep.subr.mxu0 0.0
    %280 = vmatpush1.msra.mxu0 0.0
    %281 = vmatprep.subr.mxu0 0.0
    %282 = vmatpush1.msra.mxu0 0.0
    %283 = vmatprep.subr.mxu0 0.0
    %284 = vmatpush1.msra.mxu0 0.0
    %285 = vmatprep.subr.mxu0 0.0
    %286 = vmatpush1.msra.mxu0 0.0
    %287 = vmatprep.subr.mxu0 0.0
    %288 = vmatpush1.msra.mxu0 0.0
    %289 = vmatprep.mubr.f32.mxu0 0.0
    %290 = vmatmul.mubr.f32.gmra.mrb[0].mxu0 %v223
    %v291 = vpop.f32.mrb[0].mxu0
    %v292 = vadd.f32 %v220, %v291
    %v293 = vpop.f32.mrb[0].mxu0
    %294 = vdwg.mxu0
    %vm295 = vcmask 31744
    %296 = vst.msk [vmem:[%s7] sm:$0xff] %vm295, %v292
    // Predicated region
    $region34: #{tpu_custom_call.1} parent=1 // pred_check
      _
    $region35: #{tpu_custom_call.1} parent=1 // pred_check_branch
      %298 = sbr.rel (0) target = $region37
    $region36: #{tpu_custom_call.1} parent=1 // pred_region
      _
    $region37: #{tpu_custom_call.1} parent=1 // pred_fallthru
      _
    // Predicated region
    $region38: #{tpu_custom_call.1} parent=1 // pred_check
      _
    $region39: #{tpu_custom_call.1} parent=1 // pred_check_branch
      %300 = sbr.rel (0) target = $region41
    $region40: #{tpu_custom_call.1} parent=1 // pred_region
      _
    $region41: #{tpu_custom_call.1} parent=1 // pred_fallthru
      _
    %301 = vsyncpa [#allocation3], 1

</llo_original>
